<compile_context>
chip_gen: v7x
topology: tpu7x:2x2x1
jax: 0.10.0
libtpu: 0.0.40
codegen_flags: <defaults>
</compile_context>

<pallas_src>
import functools

import jax
import jax.numpy as jnp
from jax import lax
from jax.experimental import pallas as pl
from jax.experimental.pallas import tpu as pltpu


def _mutual_attention_kernel(
    x_ref, y_ref,                # (C, HWp) image / event slabs for this batch element
    wq_ref, bq_ref,              # (C, C), (C, 1)
    wkv_ref, bkv_ref,            # (2C, C), (2C, 1)   stacked [k; v] projection
    wo_ref, bo_ref,              # (C, C), (C, 1)
    tscale_ref, tbias_ref,       # (C, C) f32: block-diag temperature scale / -1e30 off-diag bias
    o_ref,                       # (C, HWp) output
    *, hw_valid: int,
):
    f32 = jnp.float32
    c, hw_pad = x_ref.shape

    # 1x1 convs == channel-mixing matmuls on the (C, HW) slab.  Native-dtype
    # operands straight to the MXU, f32 accumulation.
    q = jnp.dot(wq_ref[...], x_ref[...], preferred_element_type=f32) + bq_ref[...]
    kv = jnp.dot(wkv_ref[...], y_ref[...], preferred_element_type=f32) + bkv_ref[...]
    k = kv[:c, :]
    v = kv[c:, :]

    if hw_valid != hw_pad:
        # Zero padded spatial columns so they don't pollute norms or q@k^T.
        valid = (lax.broadcasted_iota(jnp.int32, (1, hw_pad), 1) < hw_valid).astype(f32)
        q = q * valid
        k = k * valid

    # F.normalize(dim=-1, eps=1e-12): x * rsqrt(max(sum(x^2), eps^2))  (EUP, no divide).
    q = q * lax.rsqrt(jnp.maximum(jnp.sum(q * q, axis=-1, keepdims=True), 1e-24))
    k = k * lax.rsqrt(jnp.maximum(jnp.sum(k * k, axis=-1, keepdims=True), 1e-24))

    # Full-width (C, C) channel attention: q @ k^T contracted over HW without
    # materializing a transpose.  Heads are separated by the precomputed
    # block-diagonal scale/bias (off-diagonal entries -> -1e30 before softmax).
    s = lax.dot_general(q, k, (((1,), (1,)), ((), ())), preferred_element_type=f32)
    s = s * tscale_ref[...] + tbias_ref[...]

    # Numerically stable softmax over the last axis (EUP reciprocal for the denom).
    s = s - jnp.max(s, axis=-1, keepdims=True)
    p = jnp.exp(s)
    attn = p * pl.reciprocal(jnp.sum(p, axis=-1, keepdims=True), approx=True)

    # One (C,C) @ (C,HW) matmul for all heads (off-head entries are exactly 0).
    out = jnp.dot(attn, v, preferred_element_type=f32)

    # project_out (1x1 conv); feed the weight's native dtype to the MXU.
    proj = jnp.dot(wo_ref[...], out.astype(wo_ref.dtype),
                   preferred_element_type=f32) + bo_ref[...]
    o_ref[...] = proj.astype(o_ref.dtype)


def mutual_attention(x, y, *, num_heads, temperature,
                     wq, wk, wv, wo, bq=None, bk=None, bv=None, bo=None):
    """Forward of Mutual_Attention(dim, num_heads, bias) on NCHW inputs.

    Weights are the 1x1-conv kernels squeezed to (C, C); biases are (C,) or None.
    """
    assert x.shape == y.shape, "feature maps from image and event branch must match"
    b, c, h, w = x.shape
    assert c % num_heads == 0, "dim must be divisible by num_heads"
    ch = c // num_heads
    hw = h * w
    hw_pad = ((hw + 127) // 128) * 128          # lane-dense loads/stores

    # NCHW -> (B, C, HW): pure reshape (spatial already contiguous), HW on lanes.
    x3 = x.reshape(b, c, hw)
    y3 = y.reshape(b, c, hw)
    if hw_pad != hw:
        pad = ((0, 0), (0, 0), (0, hw_pad - hw))
        x3 = jnp.pad(x3, pad)
        y3 = jnp.pad(y3, pad)

    def _bias(bvec):
        return (bvec if bvec is not None else jnp.zeros((c,), x.dtype)).reshape(c, 1)

    # Fuse k and v projections: one (2C, C) weight applied to y.
    wkv = jnp.concatenate([wk, wv], axis=0)
    bkv = jnp.concatenate([_bias(bk), _bias(bv)], axis=0)
    bq2, bo2 = _bias(bq), _bias(bo)

    # Block-diagonal per-head temperature scale + off-diagonal -inf-ish bias,
    # precomputed once in the wrapper (avoids per-step iota / int-div in kernel).
    temp_row = jnp.repeat(jnp.asarray(temperature, jnp.float32).reshape(num_heads), ch)  # (C,)
    head_ids = jnp.arange(c) // ch
    same_head = head_ids[:, None] == head_ids[None, :]
    tscale = jnp.where(same_head, temp_row[:, None], 0.0).astype(jnp.float32)   # (C, C)
    tbias = jnp.where(same_head, 0.0, -1e30).astype(jnp.float32)                # (C, C)

    img_spec = pl.BlockSpec((None, c, hw_pad), lambda i: (i, 0, 0))   # one image per grid step
    w_c = pl.BlockSpec((c, c), lambda i: (0, 0))
    w_2c = pl.BlockSpec((2 * c, c), lambda i: (0, 0))
    b_c = pl.BlockSpec((c, 1), lambda i: (0, 0))
    b_2c = pl.BlockSpec((2 * c, 1), lambda i: (0, 0))
    cc_spec = pl.BlockSpec((c, c), lambda i: (0, 0))

    # Size the scoped VMEM from the actual footprint (double-buffered x/y/out,
    # replicated weights, f32 intermediates) with headroom; clamp to 64 MiB so
    # the limit is also valid on v7x.
    in_item = jnp.dtype(x.dtype).itemsize
    w_item = jnp.dtype(wq.dtype).itemsize
    est = (3 * 2 * c * hw_pad * in_item          # x, y, out (double-buffered)
           + 2 * 4 * c * c * w_item              # wq, wkv, wo (double-buffered)
           + 10 * c * hw_pad * 4                 # f32 intermediates (q, kv, out, proj, ...)
           + 8 * c * c * 4)                      # attn tiles, tscale/tbias
    vmem_limit = int(min(max(4 * est, 16 * 2 ** 20), 64 * 2 ** 20))

    out3 = pl.pallas_call(
        functools.partial(_mutual_attention_kernel, hw_valid=hw),
        out_shape=jax.ShapeDtypeStruct((b, c, hw_pad), x.dtype),
        grid=(b,),
        in_specs=[
            img_spec, img_spec,            # x, y
            w_c, b_c,                      # q proj
            w_2c, b_2c,                    # fused k/v proj
            w_c, b_c,                      # output proj
            cc_spec, cc_spec,              # temperature scale / mask bias
        ],
        out_specs=img_spec,
        compiler_params=pltpu.CompilerParams(
            dimension_semantics=("parallel",),     # batch elements independent
            vmem_limit_bytes=vmem_limit,
        ),
    )(x3, y3, wq, bq2, wkv, bkv, wo, bo2, tscale, tbias)

    if hw_pad != hw:
        out3 = out3[:, :, :hw]
    return out3.reshape(b, c, h, w)


def _reference(x, y, *, num_heads, temperature, wq, wk, wv, wo, bq, bk, bv, bo):
    """Pure-JAX mirror of the PyTorch forward."""
    b, c, h, w = x.shape
    hw = h * w
    ch = c // num_heads
    f32 = jnp.float32

    def conv1x1(inp, wm, bvec):
        out = jnp.einsum("oc,bcs->bos", wm.astype(f32), inp.reshape(b, c, hw).astype(f32))
        if bvec is not None:
            out = out + bvec.astype(f32)[None, :, None]
        return out

    q = conv1x1(x, wq, bq).reshape(b, num_heads, ch, hw)
    k = conv1x1(y, wk, bk).reshape(b, num_heads, ch, hw)
    v = conv1x1(y, wv, bv).reshape(b, num_heads, ch, hw)

    def l2n(a):
        return a / jnp.maximum(jnp.sqrt(jnp.sum(a * a, axis=-1, keepdims=True)), 1e-12)

    q, k = l2n(q), l2n(k)
    attn = jnp.einsum("bhcs,bhds->bhcd", q, k) * temperature.reshape(1, num_heads, 1, 1).astype(f32)
    attn = jax.nn.softmax(attn, axis=-1)
    out = jnp.einsum("bhcd,bhds->bhcs", attn, v).reshape(b, c, hw)
    out = jnp.einsum("oc,bcs->bos", wo.astype(f32), out)
    if bo is not None:
        out = out + bo.astype(f32)[None, :, None]
    return out.reshape(b, c, h, w).astype(x.dtype)


if __name__ == "__main__":
    key = jax.random.PRNGKey(0)
    B, C, H, W = 2, 32, 16, 16          # dim = 32 channels, 16x16 feature map
    NUM_HEADS = 2

    keys = jax.random.split(key, 10)
    x = jax.random.normal(keys[0], (B, C, H, W), jnp.float32)
    y = jax.random.normal(keys[1], (B, C, H, W), jnp.float32)

    scale = 1.0 / jnp.sqrt(jnp.float32(C))
    wq = jax.random.normal(keys[2], (C, C), jnp.float32) * scale
    wk = jax.random.normal(keys[3], (C, C), jnp.float32) * scale
    wv = jax.random.normal(keys[4], (C, C), jnp.float32) * scale
    wo = jax.random.normal(keys[5], (C, C), jnp.float32) * scale
    bq = jax.random.normal(keys[6], (C,), jnp.float32) * 0.1
    bk = jax.random.normal(keys[7], (C,), jnp.float32) * 0.1
    bv = jax.random.normal(keys[8], (C,), jnp.float32) * 0.1
    bo = jax.random.normal(keys[9], (C,), jnp.float32) * 0.1
    # temperature parameter (nn.Parameter(ones) at init; use non-trivial values here)
    temperature = jnp.linspace(0.5, 1.5, NUM_HEADS).astype(jnp.float32)

    out = mutual_attention(x, y, num_heads=NUM_HEADS, temperature=temperature,
                           wq=wq, wk=wk, wv=wv, wo=wo, bq=bq, bk=bk, bv=bv, bo=bo)
    out = jax.block_until_ready(out)

    ref = _reference(x, y, num_heads=NUM_HEADS, temperature=temperature,
                     wq=wq, wk=wk, wv=wv, wo=wo, bq=bq, bk=bk, bv=bv, bo=bo)

    err = float(jnp.max(jnp.abs(out.astype(jnp.float32) - ref.astype(jnp.float32))))
    if jnp.isfinite(err) and err < 2e-2:
        print("KERNEL_OK")
    else:
        print(f"MISMATCH: max abs err = {err}")
</pallas_src>

<mosaic_0001>
module attributes {stable_mosaic.version = 11 : i64} {
  func.func @_mutual_attention_kernel(%arg0: i32, %arg1: memref<1x32x256xf32, #tpu.memory_space<vmem>>, %arg2: memref<1x32x256xf32, #tpu.memory_space<vmem>>, %arg3: memref<32x32xf32, #tpu.memory_space<vmem>>, %arg4: memref<32x1xf32, #tpu.memory_space<vmem>>, %arg5: memref<64x32xf32, #tpu.memory_space<vmem>>, %arg6: memref<64x1xf32, #tpu.memory_space<vmem>>, %arg7: memref<32x32xf32, #tpu.memory_space<vmem>>, %arg8: memref<32x1xf32, #tpu.memory_space<vmem>>, %arg9: memref<32x32xf32, #tpu.memory_space<vmem>>, %arg10: memref<32x32xf32, #tpu.memory_space<vmem>>, %arg11: memref<1x32x256xf32, #tpu.memory_space<vmem>>) attributes {dimension_semantics = [#tpu.dimension_semantics<parallel>], iteration_bounds = array<i64: 2>, scalar_prefetch = 0 : i64, scratch_operands = 0 : i64, tpu.core_type = #tpu.core_type<tc>, window_params = [{transform_indices = @transform_0, window_bounds = array<i64: 1, 32, 256>}, {transform_indices = @transform_1, window_bounds = array<i64: 1, 32, 256>}, {pipeline_mode = #tpu.pipeline_mode<synchronous>, transform_indices = @transform_2, window_bounds = array<i64: 32, 32>}, {pipeline_mode = #tpu.pipeline_mode<synchronous>, transform_indices = @transform_3, window_bounds = array<i64: 32, 1>}, {pipeline_mode = #tpu.pipeline_mode<synchronous>, transform_indices = @transform_4, window_bounds = array<i64: 64, 32>}, {pipeline_mode = #tpu.pipeline_mode<synchronous>, transform_indices = @transform_5, window_bounds = array<i64: 64, 1>}, {pipeline_mode = #tpu.pipeline_mode<synchronous>, transform_indices = @transform_6, window_bounds = array<i64: 32, 32>}, {pipeline_mode = #tpu.pipeline_mode<synchronous>, transform_indices = @transform_7, window_bounds = array<i64: 32, 1>}, {pipeline_mode = #tpu.pipeline_mode<synchronous>, transform_indices = @transform_8, window_bounds = array<i64: 32, 32>}, {pipeline_mode = #tpu.pipeline_mode<synchronous>, transform_indices = @transform_9, window_bounds = array<i64: 32, 32>}, {transform_indices = @transform_10, window_bounds = array<i64: 1, 32, 256>}]} {
    %c0 = arith.constant 0 : index
    %c0_0 = arith.constant 0 : index
    %0 = vector.load %arg3[%c0, %c0_0] : memref<32x32xf32, #tpu.memory_space<vmem>>, vector<32x32xf32>
    %c0_1 = arith.constant 0 : index
    %c0_2 = arith.constant 0 : index
    %c0_3 = arith.constant 0 : index
    %1 = vector.load %arg1[%c0_1, %c0_2, %c0_3] : memref<1x32x256xf32, #tpu.memory_space<vmem>>, vector<1x32x256xf32>
    %2 = vector.shape_cast %1 : vector<1x32x256xf32> to vector<32x256xf32>
    %cst = arith.constant dense<0.000000e+00> : vector<32x256xf32>
    %3 = tpu.matmul %0, %2, %cst {dimension_numbers = #tpu.dot_dimension_numbers<[1], [0], [0], [1], [0, 0, 1, 1], [], []>} : vector<32x32xf32>, vector<32x256xf32>, vector<32x256xf32> -> vector<32x256xf32>
    %c0_4 = arith.constant 0 : index
    %c0_5 = arith.constant 0 : index
    %4 = vector.load %arg4[%c0_4, %c0_5] : memref<32x1xf32, #tpu.memory_space<vmem>>, vector<32x1xf32>
    %5 = vector.broadcast %4 : vector<32x1xf32> to vector<32x256xf32>
    %6 = arith.addf %3, %5 : vector<32x256xf32>
    %c0_6 = arith.constant 0 : index
    %c0_7 = arith.constant 0 : index
    %7 = vector.load %arg5[%c0_6, %c0_7] : memref<64x32xf32, #tpu.memory_space<vmem>>, vector<64x32xf32>
    %c0_8 = arith.constant 0 : index
    %c0_9 = arith.constant 0 : index
    %c0_10 = arith.constant 0 : index
    %8 = vector.load %arg2[%c0_8, %c0_9, %c0_10] : memref<1x32x256xf32, #tpu.memory_space<vmem>>, vector<1x32x256xf32>
    %9 = vector.shape_cast %8 : vector<1x32x256xf32> to vector<32x256xf32>
    %cst_11 = arith.constant dense<0.000000e+00> : vector<64x256xf32>
    %10 = tpu.matmul %7, %9, %cst_11 {dimension_numbers = #tpu.dot_dimension_numbers<[1], [0], [0], [1], [0, 0, 1, 1], [], []>} : vector<64x32xf32>, vector<32x256xf32>, vector<64x256xf32> -> vector<64x256xf32>
    %c0_12 = arith.constant 0 : index
    %c0_13 = arith.constant 0 : index
    %11 = vector.load %arg6[%c0_12, %c0_13] : memref<64x1xf32, #tpu.memory_space<vmem>>, vector<64x1xf32>
    %12 = vector.broadcast %11 : vector<64x1xf32> to vector<64x256xf32>
    %13 = arith.addf %10, %12 : vector<64x256xf32>
    %14 = vector.extract_strided_slice %13 {offsets = [0, 0], sizes = [32, 256], strides = [1, 1]} : vector<64x256xf32> to vector<32x256xf32>
    %15 = vector.extract_strided_slice %13 {offsets = [32, 0], sizes = [32, 256], strides = [1, 1]} : vector<64x256xf32> to vector<32x256xf32>
    %16 = arith.mulf %6, %6 : vector<32x256xf32>
    %cst_14 = arith.constant dense<0.000000e+00> : vector<32xf32>
    %17 = vector.multi_reduction <add>, %16, %cst_14 [1] : vector<32x256xf32> to vector<32xf32>
    %18 = vector.shape_cast %17 : vector<32xf32> to vector<32x1xf32>
    %cst_15 = arith.constant 1.000000e-24 : f32
    %19 = vector.broadcast %cst_15 : f32 to vector<32x1xf32>
    %20 = arith.maximumf %18, %19 : vector<32x1xf32>
    %21 = math.rsqrt %20 : vector<32x1xf32>
    %22 = vector.broadcast %21 : vector<32x1xf32> to vector<32x256xf32>
    %23 = arith.mulf %6, %22 : vector<32x256xf32>
    %24 = arith.mulf %14, %14 : vector<32x256xf32>
    %cst_16 = arith.constant dense<0.000000e+00> : vector<32xf32>
    %25 = vector.multi_reduction <add>, %24, %cst_16 [1] : vector<32x256xf32> to vector<32xf32>
    %26 = vector.shape_cast %25 : vector<32xf32> to vector<32x1xf32>
    %cst_17 = arith.constant 1.000000e-24 : f32
    %27 = vector.broadcast %cst_17 : f32 to vector<32x1xf32>
    %28 = arith.maximumf %26, %27 : vector<32x1xf32>
    %29 = math.rsqrt %28 : vector<32x1xf32>
    %30 = vector.broadcast %29 : vector<32x1xf32> to vector<32x256xf32>
    %31 = arith.mulf %14, %30 : vector<32x256xf32>
    %cst_18 = arith.constant dense<0.000000e+00> : vector<32x32xf32>
    %32 = tpu.matmul %23, %31, %cst_18 {dimension_numbers = #tpu.dot_dimension_numbers<[1], [1], [0], [0], [0, 0, 1, 0], [], []>} : vector<32x256xf32>, vector<32x256xf32>, vector<32x32xf32> -> vector<32x32xf32>
    %c0_19 = arith.constant 0 : index
    %c0_20 = arith.constant 0 : index
    %33 = vector.load %arg9[%c0_19, %c0_20] : memref<32x32xf32, #tpu.memory_space<vmem>>, vector<32x32xf32>
    %34 = arith.mulf %32, %33 : vector<32x32xf32>
    %c0_21 = arith.constant 0 : index
    %c0_22 = arith.constant 0 : index
    %35 = vector.load %arg10[%c0_21, %c0_22] : memref<32x32xf32, #tpu.memory_space<vmem>>, vector<32x32xf32>
    %36 = arith.addf %34, %35 : vector<32x32xf32>
    %cst_23 = arith.constant dense<0xFF800000> : vector<32xf32>
    %37 = vector.multi_reduction <maximumf>, %36, %cst_23 [1] : vector<32x32xf32> to vector<32xf32>
    %38 = vector.shape_cast %37 : vector<32xf32> to vector<32x1xf32>
    %39 = vector.broadcast %38 : vector<32x1xf32> to vector<32x32xf32>
    %40 = arith.subf %36, %39 : vector<32x32xf32>
    %41 = math.exp %40 : vector<32x32xf32>
    %cst_24 = arith.constant dense<0.000000e+00> : vector<32xf32>
    %42 = vector.multi_reduction <add>, %41, %cst_24 [1] : vector<32x32xf32> to vector<32xf32>
    %43 = vector.shape_cast %42 : vector<32xf32> to vector<32x1xf32>
    %44 = tpu.reciprocal %43 {approx = true} : vector<32x1xf32> -> vector<32x1xf32>
    %45 = vector.broadcast %44 : vector<32x1xf32> to vector<32x32xf32>
    %46 = arith.mulf %41, %45 : vector<32x32xf32>
    %cst_25 = arith.constant dense<0.000000e+00> : vector<32x256xf32>
    %47 = tpu.matmul %46, %15, %cst_25 {dimension_numbers = #tpu.dot_dimension_numbers<[1], [0], [0], [1], [0, 0, 1, 1], [], []>} : vector<32x32xf32>, vector<32x256xf32>, vector<32x256xf32> -> vector<32x256xf32>
    %c0_26 = arith.constant 0 : index
    %c0_27 = arith.constant 0 : index
    %48 = vector.load %arg7[%c0_26, %c0_27] : memref<32x32xf32, #tpu.memory_space<vmem>>, vector<32x32xf32>
    %cst_28 = arith.constant dense<0.000000e+00> : vector<32x256xf32>
    %49 = tpu.matmul %48, %47, %cst_28 {dimension_numbers = #tpu.dot_dimension_numbers<[1], [0], [0], [1], [0, 0, 1, 1], [], []>} : vector<32x32xf32>, vector<32x256xf32>, vector<32x256xf32> -> vector<32x256xf32>
    %c0_29 = arith.constant 0 : index
    %c0_30 = arith.constant 0 : index
    %50 = vector.load %arg8[%c0_29, %c0_30] : memref<32x1xf32, #tpu.memory_space<vmem>>, vector<32x1xf32>
    %51 = vector.broadcast %50 : vector<32x1xf32> to vector<32x256xf32>
    %52 = arith.addf %49, %51 : vector<32x256xf32>
    %c0_31 = arith.constant 0 : index
    %c0_32 = arith.constant 0 : index
    %c0_33 = arith.constant 0 : index
    %53 = vector.load %arg11[%c0_31, %c0_32, %c0_33] : memref<1x32x256xf32, #tpu.memory_space<vmem>>, vector<1x32x256xf32>
    %54 = vector.shape_cast %53 : vector<1x32x256xf32> to vector<32x256xf32>
    %55 = vector.shape_cast %52 : vector<32x256xf32> to vector<1x32x256xf32>
    tpu.vector_store %arg11[%c0_31, %c0_32, %c0_33], %55 {strides = array<i32>} : memref<1x32x256xf32, #tpu.memory_space<vmem>>, vector<1x32x256xf32>,
    return
  }
  func.func @transform_0(%arg0: i32) -> (i32, i32, i32) {
    %c0_i32 = arith.constant 0 : i32
    %c0_i32_0 = arith.constant 0 : i32
    %c0_i32_1 = arith.constant 0 : i32
    return %arg0, %c0_i32, %c0_i32_0 : i32, i32, i32
  }
  func.func @transform_1(%arg0: i32) -> (i32, i32, i32) {
    %c0_i32 = arith.constant 0 : i32
    %c0_i32_0 = arith.constant 0 : i32
    %c0_i32_1 = arith.constant 0 : i32
    return %arg0, %c0_i32, %c0_i32_0 : i32, i32, i32
  }
  func.func @transform_2(%arg0: i32) -> (i32, i32) {
    %c0_i32 = arith.constant 0 : i32
    %c0_i32_0 = arith.constant 0 : i32
    %c0_i32_1 = arith.constant 0 : i32
    return %c0_i32, %c0_i32_0 : i32, i32
  }
  func.func @transform_3(%arg0: i32) -> (i32, i32) {
    %c0_i32 = arith.constant 0 : i32
    %c0_i32_0 = arith.constant 0 : i32
    %c0_i32_1 = arith.constant 0 : i32
    return %c0_i32, %c0_i32_0 : i32, i32
  }
  func.func @transform_4(%arg0: i32) -> (i32, i32) {
    %c0_i32 = arith.constant 0 : i32
    %c0_i32_0 = arith.constant 0 : i32
    %c0_i32_1 = arith.constant 0 : i32
    return %c0_i32, %c0_i32_0 : i32, i32
  }
  func.func @transform_5(%arg0: i32) -> (i32, i32) {
    %c0_i32 = arith.constant 0 : i32
    %c0_i32_0 = arith.constant 0 : i32
    %c0_i32_1 = arith.constant 0 : i32
    return %c0_i32, %c0_i32_0 : i32, i32
  }
  func.func @transform_6(%arg0: i32) -> (i32, i32) {
    %c0_i32 = arith.constant 0 : i32
    %c0_i32_0 = arith.constant 0 : i32
    %c0_i32_1 = arith.constant 0 : i32
    return %c0_i32, %c0_i32_0 : i32, i32
  }
  func.func @transform_7(%arg0: i32) -> (i32, i32) {
    %c0_i32 = arith.constant 0 : i32
    %c0_i32_0 = arith.constant 0 : i32
    %c0_i32_1 = arith.constant 0 : i32
    return %c0_i32, %c0_i32_0 : i32, i32
  }
  func.func @transform_8(%arg0: i32) -> (i32, i32) {
    %c0_i32 = arith.constant 0 : i32
    %c0_i32_0 = arith.constant 0 : i32
    %c0_i32_1 = arith.constant 0 : i32
    return %c0_i32, %c0_i32_0 : i32, i32
  }
  func.func @transform_9(%arg0: i32) -> (i32, i32) {
    %c0_i32 = arith.constant 0 : i32
    %c0_i32_0 = arith.constant 0 : i32
    %c0_i32_1 = arith.constant 0 : i32
    return %c0_i32, %c0_i32_0 : i32, i32
  }
  func.func @transform_10(%arg0: i32) -> (i32, i32, i32) {
    %c0_i32 = arith.constant 0 : i32
    %c0_i32_0 = arith.constant 0 : i32
    %c0_i32_1 = arith.constant 0 : i32
    return %arg0, %c0_i32, %c0_i32_0 : i32, i32, i32
  }
}

</mosaic_0001>

<llo_original>
// kernel: tpu_custom_call.1
$region0: #{tpu_custom_call.1}
  #allocation0 [shape = 'u32[]', space=smem, size = 0x4, offset = 0x4, fixed_abs, tag = 'smem constant byte address 0x4 - core index']
  #allocation1 [shape = 'u32[144,128]{1,0:T(1,128)}', space=vmem, size = 0x12000, scoped, tag = 'internal scratch']
  %s0 = inlined_call_operand.vmem [shape: f32[2,32,256], index: 0, kind: input, shape index: {}]
  %s1 = inlined_call_operand.hbm [shape: f32[2,32,256], index: 1, kind: input, shape index: {}]
  %s2 = inlined_call_operand.vmem [shape: f32[32,32], index: 2, kind: input, shape index: {}]
  %s3 = inlined_call_operand.vmem [shape: f32[32,1], index: 3, kind: input, shape index: {}]
  %s4 = inlined_call_operand.vmem [shape: f32[64,32], index: 4, kind: input, shape index: {}]
  %s5 = inlined_call_operand.vmem [shape: f32[64,1], index: 5, kind: input, shape index: {}]
  %s6 = inlined_call_operand.vmem [shape: f32[32,32], index: 6, kind: input, shape index: {}]
  %s7 = inlined_call_operand.vmem [shape: f32[32,1], index: 7, kind: input, shape index: {}]
  %s8 = inlined_call_operand.vmem [shape: f32[32,32], index: 8, kind: input, shape index: {}]
  %s9 = inlined_call_operand.hbm [shape: f32[32,32], index: 9, kind: input, shape index: {}]
  %s10 = inlined_call_operand.hbm [shape: f32[2,32,256], index: 10, kind: output, shape index: {}]
  %s11 = sld [smem:[#allocation0]]
  $region81: #{tpu_custom_call.1} parent=0
    _
  %s13 = ssub.s32 1, %s11
  %s14 = scalar_select 0, %s13, %s11
  $region1: #{tpu_custom_call.1} parent=0
    #allocation2 [shape = 'u8[65536]{0}', space=vmem, size = 0x10000, scoped, tag = 'input window, operand 1']
    #allocation3 [shape = 's32[2]{0}', space=sflag, size = 0x8, scoped, tag = 'scoped memory for tpu_custom_call.1']
    #allocation4 [shape = 's32[2]{0}', space=sflag, size = 0x8, scoped, tag = 'scoped memory for tpu_custom_call.1']
    #allocation5 [shape = 'u8[16384]{0}', space=vmem, size = 0x4000, scoped, tag = 'input window, operand 9, single buffered']
    #allocation6 [shape = 's32[1]{0}', space=sflag, size = 0x4, scoped, tag = 'scoped memory for tpu_custom_call.1']
    #allocation7 [shape = 'u8[65536]{0}', space=vmem, size = 0x10000, scoped, tag = 'output window, operand 0']
    %15 = vsyncpa [#allocation3], 0
    %s16 = scalar_lea.sflag [#allocation3], 1
    %17 = vsyncpa %s16, 0
    %18 = vsyncpa [#allocation6], 0
    %19 = vsyncpa [#allocation4], 0
    %s20 = scalar_lea.sflag [#allocation4], 1
    %21 = vsyncpa %s20, 0
    loop: start=0, step=1, limit=4
    $region2: #{tpu_custom_call.1} parent=1 // loop_pre_header
      _
    $region3: #{tpu_custom_call.1} parent=1 // loop_header
      %s23 = sphi 0, %s27
      %p24 = scmp.ge.s32.totalorder %s23, 4
      %s33 = sphi 0, %s35
      %s36 = sphi 0, %s33
      %s37 = sphi 0, %s36
      %s53 = sphi 0, %s37
      %s59 = sphi 0, %s61
      %s62 = sphi 0, %s59
      %s63 = sphi 0, %s62
      %s79 = sphi 0, %s63
      %s83 = sphi 0, %s83
      %s85 = sphi 0, %s83
      %s86 = sphi 0, %s85
      %s100 = sphi 0, %s86
      %s104 = sphi 0, %s104
      %s106 = sphi 0, %s104
      %s107 = sphi 0, %s106
      %s121 = sphi 0, %s107
      %s125 = sphi 0, %s125
      %s127 = sphi 0, %s125
      %s128 = sphi 0, %s127
      %s142 = sphi 0, %s128
      %s146 = sphi 0, %s146
      %s148 = sphi 0, %s146
      %s149 = sphi 0, %s148
      %s163 = sphi 0, %s149
      %s167 = sphi 0, %s167
      %s169 = sphi 0, %s167
      %s170 = sphi 0, %s169
      %s184 = sphi 0, %s170
      %s188 = sphi 0, %s188
      %s190 = sphi 0, %s188
      %s191 = sphi 0, %s190
      %s205 = sphi 0, %s191
      %s209 = sphi 0, %s209
      %s211 = sphi 0, %s209
      %s212 = sphi 0, %s211
      %s226 = sphi 0, %s212
      %s230 = sphi 0, %s230
      %s232 = sphi 0, %s230
      %s233 = sphi 0, %s232
      %s247 = sphi 0, %s233
      %s253 = sphi 0, %s255
      %s256 = sphi 0, %s253
      %s257 = sphi 0, %s256
      %s273 = sphi 0, %s257
    $region4: #{tpu_custom_call.1} parent=1 // loop_header_branch
      %26 = sbr.rel (%p24) target = $region8
    $region5: #{tpu_custom_call.1} parent=1 // loop_body
      %s28 = ssub.s32 %s23, 1
      %s29 = ssub.s32 %s23, 2
      %s30 = sadd.s32 %s23, 1
      %s31 = ssub.s32 %s23, %s30
      %p32 = scmp.eq.s32.totalorder %s31, 0
      %s34 = sadd.s32 %s33, 1
      %s35 = scalar_select %p32, %s33, %s34
      %p38 = pneg %p32
      %p39 = scmp.eq.s32.totalorder %s23, 1
      %p40 = por %p38, %p39
      %p41 = scmp.ne.s32.totalorder %s33, %s36
      %p42 = scmp.eq.s32.totalorder %s23, 0
      %p43 = por %p41, %p42
      %p44 = scmp.ne.s32.totalorder %s33, %s36
      %p45 = scmp.eq.s32.totalorder %s28, 1
      %p46 = por %p44, %p45
      %p47 = scmp.ne.s32.totalorder %s36, %s37
      %p48 = scmp.eq.s32.totalorder %s28, 0
      %p49 = por %p47, %p48
      %p50 = scmp.ne.s32.totalorder %s36, %s37
      %p51 = scmp.eq.s32.totalorder %s29, 1
      %p52 = por %p50, %p51
      %p54 = scmp.ne.s32.totalorder %s37, %s53
      %p55 = scmp.eq.s32.totalorder %s29, 0
      %p56 = por %p54, %p55
      %s57 = ssub.s32 %s23, %s30
      %p58 = scmp.eq.s32.totalorder %s57, 0
      %s60 = sadd.s32 %s59, 1
      %s61 = scalar_select %p58, %s59, %s60
      %p64 = pneg %p58
      %p65 = scmp.eq.s32.totalorder %s23, 1
      %p66 = por %p64, %p65
      %p67 = scmp.ne.s32.totalorder %s59, %s62
      %p68 = scmp.eq.s32.totalorder %s23, 0
      %p69 = por %p67, %p68
      %p70 = scmp.ne.s32.totalorder %s59, %s62
      %p71 = scmp.eq.s32.totalorder %s28, 1
      %p72 = por %p70, %p71
      %p73 = scmp.ne.s32.totalorder %s62, %s63
      %p74 = scmp.eq.s32.totalorder %s28, 0
      %p75 = por %p73, %p74
      %p76 = scmp.ne.s32.totalorder %s62, %s63
      %p77 = scmp.eq.s32.totalorder %s29, 1
      %p78 = por %p76, %p77
      %p80 = scmp.ne.s32.totalorder %s63, %s79
      %p81 = scmp.eq.s32.totalorder %s29, 0
      %p82 = por %p80, %p81
      %s84 = sadd.s32 %s83, 1
      %p87 = scmp.eq.s32.totalorder %s23, 1
      %p88 = scmp.ne.s32.totalorder %s83, %s85
      %p89 = scmp.eq.s32.totalorder %s23, 0
      %p90 = por %p88, %p89
      %p91 = scmp.ne.s32.totalorder %s83, %s85
      %p92 = scmp.eq.s32.totalorder %s28, 1
      %p93 = por %p91, %p92
      %p94 = scmp.ne.s32.totalorder %s85, %s86
      %p95 = scmp.eq.s32.totalorder %s28, 0
      %p96 = por %p94, %p95
      %p97 = scmp.ne.s32.totalorder %s85, %s86
      %p98 = scmp.eq.s32.totalorder %s29, 1
      %p99 = por %p97, %p98
      %p101 = scmp.ne.s32.totalorder %s86, %s100
      %p102 = scmp.eq.s32.totalorder %s29, 0
      %p103 = por %p101, %p102
      %s105 = sadd.s32 %s104, 1
      %p108 = scmp.eq.s32.totalorder %s23, 1
      %p109 = scmp.ne.s32.totalorder %s104, %s106
      %p110 = scmp.eq.s32.totalorder %s23, 0
      %p111 = por %p109, %p110
      %p112 = scmp.ne.s32.totalorder %s104, %s106
      %p113 = scmp.eq.s32.totalorder %s28, 1
      %p114 = por %p112, %p113
      %p115 = scmp.ne.s32.totalorder %s106, %s107
      %p116 = scmp.eq.s32.totalorder %s28, 0
      %p117 = por %p115, %p116
      %p118 = scmp.ne.s32.totalorder %s106, %s107
      %p119 = scmp.eq.s32.totalorder %s29, 1
      %p120 = por %p118, %p119
      %p122 = scmp.ne.s32.totalorder %s107, %s121
      %p123 = scmp.eq.s32.totalorder %s29, 0
      %p124 = por %p122, %p123
      %s126 = sadd.s32 %s125, 1
      %p129 = scmp.eq.s32.totalorder %s23, 1
      %p130 = scmp.ne.s32.totalorder %s125, %s127
      %p131 = scmp.eq.s32.totalorder %s23, 0
      %p132 = por %p130, %p131
      %p133 = scmp.ne.s32.totalorder %s125, %s127
      %p134 = scmp.eq.s32.totalorder %s28, 1
      %p135 = por %p133, %p134
      %p136 = scmp.ne.s32.totalorder %s127, %s128
      %p137 = scmp.eq.s32.totalorder %s28, 0
      %p138 = por %p136, %p137
      %p139 = scmp.ne.s32.totalorder %s127, %s128
      %p140 = scmp.eq.s32.totalorder %s29, 1
      %p141 = por %p139, %p140
      %p143 = scmp.ne.s32.totalorder %s128, %s142
      %p144 = scmp.eq.s32.totalorder %s29, 0
      %p145 = por %p143, %p144
      %s147 = sadd.s32 %s146, 1
      %p150 = scmp.eq.s32.totalorder %s23, 1
      %p151 = scmp.ne.s32.totalorder %s146, %s148
      %p152 = scmp.eq.s32.totalorder %s23, 0
      %p153 = por %p151, %p152
      %p154 = scmp.ne.s32.totalorder %s146, %s148
      %p155 = scmp.eq.s32.totalorder %s28, 1
      %p156 = por %p154, %p155
      %p157 = scmp.ne.s32.totalorder %s148, %s149
      %p158 = scmp.eq.s32.totalorder %s28, 0
      %p159 = por %p157, %p158
      %p160 = scmp.ne.s32.totalorder %s148, %s149
      %p161 = scmp.eq.s32.totalorder %s29, 1
      %p162 = por %p160, %p161
      %p164 = scmp.ne.s32.totalorder %s149, %s163
      %p165 = scmp.eq.s32.totalorder %s29, 0
      %p166 = por %p164, %p165
      %s168 = sadd.s32 %s167, 1
      %p171 = scmp.eq.s32.totalorder %s23, 1
      %p172 = scmp.ne.s32.totalorder %s167, %s169
      %p173 = scmp.eq.s32.totalorder %s23, 0
      %p174 = por %p172, %p173
      %p175 = scmp.ne.s32.totalorder %s167, %s169
      %p176 = scmp.eq.s32.totalorder %s28, 1
      %p177 = por %p175, %p176
      %p178 = scmp.ne.s32.totalorder %s169, %s170
      %p179 = scmp.eq.s32.totalorder %s28, 0
      %p180 = por %p178, %p179
      %p181 = scmp.ne.s32.totalorder %s169, %s170
      %p182 = scmp.eq.s32.totalorder %s29, 1
      %p183 = por %p181, %p182
      %p185 = scmp.ne.s32.totalorder %s170, %s184
      %p186 = scmp.eq.s32.totalorder %s29, 0
      %p187 = por %p185, %p186
      %s189 = sadd.s32 %s188, 1
      %p192 = scmp.eq.s32.totalorder %s23, 1
      %p193 = scmp.ne.s32.totalorder %s188, %s190
      %p194 = scmp.eq.s32.totalorder %s23, 0
      %p195 = por %p193, %p194
      %p196 = scmp.ne.s32.totalorder %s188, %s190
      %p197 = scmp.eq.s32.totalorder %s28, 1
      %p198 = por %p196, %p197
      %p199 = scmp.ne.s32.totalorder %s190, %s191
      %p200 = scmp.eq.s32.totalorder %s28, 0
      %p201 = por %p199, %p200
      %p202 = scmp.ne.s32.totalorder %s190, %s191
      %p203 = scmp.eq.s32.totalorder %s29, 1
      %p204 = por %p202, %p203
      %p206 = scmp.ne.s32.totalorder %s191, %s205
      %p207 = scmp.eq.s32.totalorder %s29, 0
      %p208 = por %p206, %p207
      %s210 = sadd.s32 %s209, 1
      %p213 = scmp.eq.s32.totalorder %s23, 1
      %p214 = scmp.ne.s32.totalorder %s209, %s211
      %p215 = scmp.eq.s32.totalorder %s23, 0
      %p216 = por %p214, %p215
      %p217 = scmp.ne.s32.totalorder %s209, %s211
      %p218 = scmp.eq.s32.totalorder %s28, 1
      %p219 = por %p217, %p218
      %p220 = scmp.ne.s32.totalorder %s211, %s212
      %p221 = scmp.eq.s32.totalorder %s28, 0
      %p222 = por %p220, %p221
      %p223 = scmp.ne.s32.totalorder %s211, %s212
      %p224 = scmp.eq.s32.totalorder %s29, 1
      %p225 = por %p223, %p224
      %p227 = scmp.ne.s32.totalorder %s212, %s226
      %p228 = scmp.eq.s32.totalorder %s29, 0
      %p229 = por %p227, %p228
      %s231 = sadd.s32 %s230, 1
      %p234 = scmp.eq.s32.totalorder %s23, 1
      %p235 = scmp.ne.s32.totalorder %s230, %s232
      %p236 = scmp.eq.s32.totalorder %s23, 0
      %p237 = por %p235, %p236
      %p238 = scmp.ne.s32.totalorder %s230, %s232
      %p239 = scmp.eq.s32.totalorder %s28, 1
      %p240 = por %p238, %p239
      %p241 = scmp.ne.s32.totalorder %s232, %s233
      %p242 = scmp.eq.s32.totalorder %s28, 0
      %p243 = por %p241, %p242
      %p244 = scmp.ne.s32.totalorder %s232, %s233
      %p245 = scmp.eq.s32.totalorder %s29, 1
      %p246 = por %p244, %p245
      %p248 = scmp.ne.s32.totalorder %s233, %s247
      %p249 = scmp.eq.s32.totalorder %s29, 0
      %p250 = por %p248, %p249
      %s251 = ssub.s32 %s23, %s30
      %p252 = scmp.eq.s32.totalorder %s251, 0
      %s254 = sadd.s32 %s253, 1
      %s255 = scalar_select %p252, %s253, %s254
      %p258 = pneg %p252
      %p259 = scmp.eq.s32.totalorder %s23, 1
      %p260 = por %p258, %p259
      %p261 = scmp.ne.s32.totalorder %s253, %s256
      %p262 = scmp.eq.s32.totalorder %s23, 0
      %p263 = por %p261, %p262
      %p264 = scmp.ne.s32.totalorder %s253, %s256
      %p265 = scmp.eq.s32.totalorder %s28, 1
      %p266 = por %p264, %p265
      %p267 = scmp.ne.s32.totalorder %s256, %s257
      %p268 = scmp.eq.s32.totalorder %s28, 0
      %p269 = por %p267, %p268
      %p270 = scmp.ne.s32.totalorder %s256, %s257
      %p271 = scmp.eq.s32.totalorder %s29, 1
      %p272 = por %p270, %p271
      %p274 = scmp.ne.s32.totalorder %s257, %s273
      %p275 = scmp.eq.s32.totalorder %s29, 0
      %p276 = por %p274, %p275
      %p277 = scmp.le.s32.totalorder 1, %s23
      %p278 = scmp.lt.s32.totalorder %s23, 3
      %p279 = pnand %p277, %p278
      %p280 = pneg %p279
      // Predicated region
      $region9: #{tpu_custom_call.1} parent=5 // pred_check
        _
      $region10: #{tpu_custom_call.1} parent=5 // pred_check_branch
        %282 = sbr.rel (%p279) target = $region12
      $region11: #{tpu_custom_call.1} parent=5 // pred_region
        %s283 = ssub.s32 %s23, 1
        // Predicated region
        $region13: #{tpu_custom_call.1} parent=11 // pred_check
          %p284 = pneg %p96
        $region14: #{tpu_custom_call.1} parent=11 // pred_check_branch
          %286 = sbr.rel (%p284) target = $region16
        $region15: #{tpu_custom_call.1} parent=11 // pred_region
          _
        $region16: #{tpu_custom_call.1} parent=11 // pred_fallthru
          _
        // Predicated region
        $region17: #{tpu_custom_call.1} parent=11 // pred_check
          %p287 = pneg %p117
        $region18: #{tpu_custom_call.1} parent=11 // pred_check_branch
          %289 = sbr.rel (%p287) target = $region20
        $region19: #{tpu_custom_call.1} parent=11 // pred_region
          _
        $region20: #{tpu_custom_call.1} parent=11 // pred_fallthru
          _
        // Predicated region
        $region21: #{tpu_custom_call.1} parent=11 // pred_check
          %p290 = pneg %p138
        $region22: #{tpu_custom_call.1} parent=11 // pred_check_branch
          %292 = sbr.rel (%p290) target = $region24
        $region23: #{tpu_custom_call.1} parent=11 // pred_region
          _
        $region24: #{tpu_custom_call.1} parent=11 // pred_fallthru
          _
        // Predicated region
        $region25: #{tpu_custom_call.1} parent=11 // pred_check
          %p293 = pneg %p159
        $region26: #{tpu_custom_call.1} parent=11 // pred_check_branch
          %295 = sbr.rel (%p293) target = $region28
        $region27: #{tpu_custom_call.1} parent=11 // pred_region
          _
        $region28: #{tpu_custom_call.1} parent=11 // pred_fallthru
          _
        // Predicated region
        $region29: #{tpu_custom_call.1} parent=11 // pred_check
          %p296 = pneg %p180
        $region30: #{tpu_custom_call.1} parent=11 // pred_check_branch
          %298 = sbr.rel (%p296) target = $region32
        $region31: #{tpu_custom_call.1} parent=11 // pred_region
          _
        $region32: #{tpu_custom_call.1} parent=11 // pred_fallthru
          _
        // Predicated region
        $region33: #{tpu_custom_call.1} parent=11 // pred_check
          %p299 = pneg %p201
        $region34: #{tpu_custom_call.1} parent=11 // pred_check_branch
          %301 = sbr.rel (%p299) target = $region36
        $region35: #{tpu_custom_call.1} parent=11 // pred_region
          _
        $region36: #{tpu_custom_call.1} parent=11 // pred_fallthru
          _
        // Predicated region
        $region37: #{tpu_custom_call.1} parent=11 // pred_check
          %p302 = pneg %p222
        $region38: #{tpu_custom_call.1} parent=11 // pred_check_branch
          %304 = sbr.rel (%p302) target = $region40
        $region39: #{tpu_custom_call.1} parent=11 // pred_region
          _
        $region40: #{tpu_custom_call.1} parent=11 // pred_fallthru
          _
        // Predicated region
        $region41: #{tpu_custom_call.1} parent=11 // pred_check
          %p305 = pneg %p243
        $region42: #{tpu_custom_call.1} parent=11 // pred_check_branch
          %307 = sbr.rel (%p305) target = $region44
        $region43: #{tpu_custom_call.1} parent=11 // pred_region
          %s309 = ssub.s32 512, 512
          %310 = vsyncadd [#allocation6], %s309
          %s311 = sshll.u32 [#allocation5], 4
          %s312 = int_to_ptr.vmem [resolvable:$true] %s311
          %317 = dma.hbm_to_vmem [thread:$0]  %s9, 512, %s312, [#allocation6], 128, 128, 8
        $region44: #{tpu_custom_call.1} parent=11 // pred_fallthru
          _
      $region12: #{tpu_custom_call.1} parent=5 // pred_fallthru
        _
      %p318 = scmp.lt.s32.totalorder %s23, 2
      // Predicated region
      $region45: #{tpu_custom_call.1} parent=5 // pred_check
        %p319 = pneg %p318
      $region46: #{tpu_custom_call.1} parent=5 // pred_check_branch
        %321 = sbr.rel (%p319) target = $region48
      $region47: #{tpu_custom_call.1} parent=5 // pred_region
        // Predicated region
        $region49: #{tpu_custom_call.1} parent=47 // pred_check
          %p322 = pneg %p43
        $region50: #{tpu_custom_call.1} parent=47 // pred_check_branch
          %324 = sbr.rel (%p322) target = $region52
        $region51: #{tpu_custom_call.1} parent=47 // pred_region
          %p325 = scmp.lt.s32.totalorder %s23, 1
          %s326 = scalar_select %p325, %s23, 1
          %s327 = smul.addr %s326, 8
          %s328 = smul.addr %s327, 8
          %s329 = scalar_lea.vmem %s0, %s328
        $region52: #{tpu_custom_call.1} parent=47 // pred_fallthru
          _
        // Predicated region
        $region53: #{tpu_custom_call.1} parent=47 // pred_check
          %p330 = pneg %p69
        $region54: #{tpu_custom_call.1} parent=47 // pred_check_branch
          %332 = sbr.rel (%p330) target = $region56
        $region55: #{tpu_custom_call.1} parent=47 // pred_region
          %s333 = sand.u32 %s59, 1
          %s334 = scalar_lea.sflag [#allocation3], %s333
          %s335 = sand.u32 %s59, 1
          %s336 = smul.addr %s335, 64
          %s337 = scalar_lea.vmem [#allocation2], %s336
          %s339 = ssub.s32 1024, 1024
          %340 = vsyncadd %s334, %s339
          %s341 = smul.addr %s23, 8
          %s342 = smul.addr %s341, 128
          %s343 = scalar_lea.hbm %s1, %s342
          %s344 = sshll.u32 %s337, 4
          %s345 = int_to_ptr.vmem [resolvable:$true] %s344
          %350 = dma.hbm_to_vmem [thread:$0]  %s343, 1024, %s345, %s334, 256, 256, 16
        $region56: #{tpu_custom_call.1} parent=47 // pred_fallthru
          _
      $region48: #{tpu_custom_call.1} parent=5 // pred_fallthru
        _
      %p351 = scmp.le.s32.totalorder 1, %s23
      %p352 = scmp.lt.s32.totalorder %s23, 3
      %p353 = pnand %p351, %p352
      %p354 = pneg %p353
      // Predicated region
      $region57: #{tpu_custom_call.1} parent=5 // pred_check
        _
      $region58: #{tpu_custom_call.1} parent=5 // pred_check_branch
        %356 = sbr.rel (%p353) target = $region60
      $region59: #{tpu_custom_call.1} parent=5 // pred_region
        %s357 = ssub.s32 %s23, 1
        %s358 = sand.u32 %s62, 1
        %s359 = scalar_lea.sflag [#allocation3], %s358
        %s360 = sand.u32 %s62, 1
        %s361 = smul.addr %s360, 64
        %s362 = scalar_lea.vmem [#allocation2], %s361
        // Predicated region
        $region61: #{tpu_custom_call.1} parent=59 // pred_check
          %p363 = pneg %p75
        $region62: #{tpu_custom_call.1} parent=59 // pred_check_branch
          %365 = sbr.rel (%p363) target = $region64
        $region63: #{tpu_custom_call.1} parent=59 // pred_region
          %366 = dma.done %s359, 1024
        $region64: #{tpu_custom_call.1} parent=59 // pred_fallthru
          _
        // Predicated region
        $region65: #{tpu_custom_call.1} parent=59 // pred_check
          %p367 = pneg %p243
        $region66: #{tpu_custom_call.1} parent=59 // pred_check_branch
          %369 = sbr.rel (%p367) target = $region68
        $region67: #{tpu_custom_call.1} parent=59 // pred_region
          %370 = dma.done [#allocation6], 512
        $region68: #{tpu_custom_call.1} parent=59 // pred_fallthru
          _
        %p371 = scmp.lt.s32.totalorder %s28, 1
        %s372 = scalar_select %p371, %s28, 1
        %s373 = smul.addr %s372, 8
        %s374 = smul.addr %s373, 8
        %s375 = scalar_lea.vmem %s0, %s374
        %p376 = pneg %p49
        %p377 = pneg %p46
        %s378 = sand.u32 %s62, 1
        %s379 = scalar_lea.sflag [#allocation3], %s378
        %s380 = sand.u32 %s62, 1
        %s381 = smul.addr %s380, 64
        %s382 = scalar_lea.vmem [#allocation2], %s381
        %p383 = pneg %p75
        %p384 = pneg %p72
        %p385 = pneg %p96
        %p386 = pneg %p93
        %p387 = pneg %p117
        %p388 = pneg %p114
        %p389 = pneg %p138
        %p390 = pneg %p135
        %p391 = pneg %p159
        %p392 = pneg %p156
        %p393 = pneg %p180
        %p394 = pneg %p177
        %p395 = pneg %p201
        %p396 = pneg %p198
        %p397 = pneg %p222
        %p398 = pneg %p219
        %p399 = pneg %p243
        %p400 = pneg %p240
        %p401 = pneg %p269
        %p402 = pneg %p266
        %s403 = sand.u32 %s256, 1
        %s404 = scalar_lea.sflag [#allocation4], %s403
        %s405 = sand.u32 %s256, 1
        %s406 = smul.addr %s405, 64
        %s407 = scalar_lea.vmem [#allocation7], %s406
        %p408 = scmp.lt.s32.totalorder %s28, 1
        %s409 = scalar_select %p408, %s28, 1
        %s410 = smul.addr %s409, 8
        %s411 = smul.addr %s410, 8
        %s412 = scalar_lea.vmem %s0, %s411
        %v413 = vld [vmem:[%s2] sm:$0xff]
        %v414 = vld [vmem:[%s2 + $0x8] sm:$0xff]
        %v415 = vld [vmem:[%s2 + $0x10] sm:$0xff]
        %v416 = vld [vmem:[%s2 + $0x18] sm:$0xff]
        %v417 = vld [vmem:[%s412] sm:$0xff]
        %v418 = vld [vmem:[%s412 + $0x8] sm:$0xff]
        %v419 = vld [vmem:[%s412 + $0x10] sm:$0xff]
        %v420 = vld [vmem:[%s412 + $0x18] sm:$0xff]
        %v421 = vld [vmem:[%s412 + $0x20] sm:$0xff]
        %v422 = vld [vmem:[%s412 + $0x28] sm:$0xff]
        %v423 = vld [vmem:[%s412 + $0x30] sm:$0xff]
        %v424 = vld [vmem:[%s412 + $0x38] sm:$0xff]
        %v425 = vld [vmem:[%s3] sm:$0xff]
        %v426 = vld [vmem:[%s3 + $0x8] sm:$0xff]
        %v427 = vld [vmem:[%s3 + $0x10] sm:$0xff]
        %v428 = vld [vmem:[%s3 + $0x18] sm:$0xff]
        %430 = vset.pattern.permute.xlu0 0
        %431 = vperm.xlu0 %430, %v425
        %v432 = vpop.permute.xlu0 %431
        %435 = vset.pattern.permute.xlu0 0
        %436 = vperm.xlu0 %435, %v426
        %v437 = vpop.permute.xlu0 %436
        %440 = vset.pattern.permute.xlu0 0
        %441 = vperm.xlu0 %440, %v427
        %v442 = vpop.permute.xlu0 %441
        %445 = vset.pattern.permute.xlu0 0
        %446 = vperm.xlu0 %445, %v428
        %v447 = vpop.permute.xlu0 %446
        %vm449 = vcmask 261120
        %v451 = vsel %vm449, %v413, 0
        %v454 = vsel %vm449, %v414, 0
        %v457 = vsel %vm449, %v415, 0
        %v460 = vsel %vm449, %v416, 0
        %462 = vmatprep.subr.mxu0 %v418
        %463 = vmatpush1.msra.mxu0 %v417
        %464 = vmatprep.subr.mxu0 %v420
        %465 = vmatpush1.msra.mxu0 %v419
        %466 = vmatprep.subr.mxu0 %v422
        %467 = vmatpush1.msra.mxu0 %v421
        %468 = vmatprep.subr.mxu0 %v424
        %469 = vmatpush1.msra.mxu0 %v423
        %470 = vmatprep.subr.mxu0 0.0
        %471 = vmatpush1.msra.mxu0 0.0
        %472 = vmatprep.subr.mxu0 0.0
        %473 = vmatpush1.msra.mxu0 0.0
        %474 = vmatprep.subr.mxu0 0.0
        %475 = vmatpush1.msra.mxu0 0.0
        %476 = vmatprep.subr.mxu0 0.0
        %477 = vmatpush1.msra.mxu0 0.0
        %478 = vmatprep.subr.mxu0 0.0
        %479 = vmatpush1.msra.mxu0 0.0
        %480 = vmatprep.subr.mxu0 0.0
        %481 = vmatpush1.msra.mxu0 0.0
        %482 = vmatprep.subr.mxu0 0.0
        %483 = vmatpush1.msra.mxu0 0.0
        %484 = vmatprep.subr.mxu0 0.0
        %485 = vmatpush1.msra.mxu0 0.0
        %486 = vmatprep.subr.mxu0 0.0
        %487 = vmatpush1.msra.mxu0 0.0
        %488 = vmatprep.subr.mxu0 0.0
        %489 = vmatpush1.msra.mxu0 0.0
        %490 = vmatprep.subr.mxu0 0.0
        %491 = vmatpush1.msra.mxu0 0.0
        %492 = vmatprep.subr.mxu0 0.0
        %493 = vmatpush1.msra.mxu0 0.0
        %494 = vmatprep.subr.mxu0 0.0
        %495 = vmatpush1.msra.mxu0 0.0
        %496 = vmatprep.subr.mxu0 0.0
        %497 = vmatpush1.msra.mxu0 0.0
        %498 = vmatprep.subr.mxu0 0.0
        %499 = vmatpush1.msra.mxu0 0.0
        %500 = vmatprep.subr.mxu0 0.0
        %501 = vmatpush1.msra.mxu0 0.0
        %502 = vmatprep.subr.mxu0 0.0
        %503 = vmatpush1.msra.mxu0 0.0
        %504 = vmatprep.subr.mxu0 0.0
        %505 = vmatpush1.msra.mxu0 0.0
        %506 = vmatprep.subr.mxu0 0.0
        %507 = vmatpush1.msra.mxu0 0.0
        %508 = vmatprep.subr.mxu0 0.0
        %509 = vmatpush1.msra.mxu0 0.0
        %510 = vmatprep.subr.mxu0 0.0
        %511 = vmatpush1.msra.mxu0 0.0
        %512 = vmatprep.subr.mxu0 0.0
        %513 = vmatpush1.msra.mxu0 0.0
        %514 = vmatprep.subr.mxu0 0.0
        %515 = vmatpush1.msra.mxu0 0.0
        %516 = vmatprep.subr.mxu0 0.0
        %517 = vmatpush1.msra.mxu0 0.0
        %518 = vmatprep.subr.mxu0 0.0
        %519 = vmatpush1.msra.mxu0 0.0
        %520 = vmatprep.subr.mxu0 0.0
        %521 = vmatpush1.msra.mxu0 0.0
        %522 = vmatprep.subr.mxu0 0.0
        %523 = vmatpush1.msra.mxu0 0.0
        %524 = vmatprep.subr.mxu0 0.0
        %525 = vmatpush1.msra.mxu0 0.0
        %526 = vmatprep.mubr.f32.mxu0 0.0
        %527 = vmatmul.mubr.f32.gmra.mrb[0].mxu0 %v451
        %v528 = vpop.f32.mrb[0].mxu0
        %v529 = vadd.f32 %v432, %v528
        %v530 = vpop.f32.mrb[0].mxu0
        %v531 = vadd.f32 %v432, %v530
        %532 = vmatprep.mubr.f32.mxu0 0.0
        %533 = vmatmul.mubr.f32.gmra.mrb[0].mxu0 %v454
        %v534 = vpop.f32.mrb[0].mxu0
        %v535 = vadd.f32 %v437, %v534
        %v536 = vpop.f32.mrb[0].mxu0
        %v537 = vadd.f32 %v437, %v536
        %538 = vmatprep.mubr.f32.mxu0 0.0
        %539 = vmatmul.mubr.f32.gmra.mrb[0].mxu0 %v457
        %v540 = vpop.f32.mrb[0].mxu0
        %v541 = vadd.f32 %v442, %v540
        %v542 = vpop.f32.mrb[0].mxu0
        %v543 = vadd.f32 %v442, %v542
        %544 = vmatprep.mubr.f32.mxu0 0.0
        %545 = vmatmul.mubr.f32.gmra.mrb[0].mxu0 %v460
        %v546 = vpop.f32.mrb[0].mxu0
        %v547 = vadd.f32 %v447, %v546
        %v548 = vpop.f32.mrb[0].mxu0
        %v549 = vadd.f32 %v447, %v548
        %550 = vdwg.mxu0
        %v551 = vld [vmem:[%s4] sm:$0xff]
        %v552 = vld [vmem:[%s4 + $0x8] sm:$0xff]
        %v553 = vld [vmem:[%s4 + $0x10] sm:$0xff]
        %v554 = vld [vmem:[%s4 + $0x18] sm:$0xff]
        %v555 = vld [vmem:[%s4 + $0x20] sm:$0xff]
        %v556 = vld [vmem:[%s4 + $0x28] sm:$0xff]
        %v557 = vld [vmem:[%s4 + $0x30] sm:$0xff]
        %v558 = vld [vmem:[%s4 + $0x38] sm:$0xff]
        %v559 = vld [vmem:[%s362] sm:$0xff]
        %v560 = vld [vmem:[%s362 + $0x8] sm:$0xff]
        %v561 = vld [vmem:[%s362 + $0x10] sm:$0xff]
        %v562 = vld [vmem:[%s362 + $0x18] sm:$0xff]
        %v563 = vld [vmem:[%s362 + $0x20] sm:$0xff]
        %v564 = vld [vmem:[%s362 + $0x28] sm:$0xff]
        %v565 = vld [vmem:[%s362 + $0x30] sm:$0xff]
        %v566 = vld [vmem:[%s362 + $0x38] sm:$0xff]
        %v567 = vld [vmem:[%s5] sm:$0xff]
        %v568 = vld [vmem:[%s5 + $0x8] sm:$0xff]
        %v569 = vld [vmem:[%s5 + $0x10] sm:$0xff]
        %v570 = vld [vmem:[%s5 + $0x18] sm:$0xff]
        %v571 = vld [vmem:[%s5 + $0x20] sm:$0xff]
        %v572 = vld [vmem:[%s5 + $0x28] sm:$0xff]
        %v573 = vld [vmem:[%s5 + $0x30] sm:$0xff]
        %v574 = vld [vmem:[%s5 + $0x38] sm:$0xff]
        %576 = vset.pattern.permute.xlu0 0
        %577 = vperm.xlu0 %576, %v567
        %v578 = vpop.permute.xlu0 %577
        %581 = vset.pattern.permute.xlu0 0
        %582 = vperm.xlu0 %581, %v568
        %v583 = vpop.permute.xlu0 %582
        %586 = vset.pattern.permute.xlu0 0
        %587 = vperm.xlu0 %586, %v569
        %v588 = vpop.permute.xlu0 %587
        %591 = vset.pattern.permute.xlu0 0
        %592 = vperm.xlu0 %591, %v570
        %v593 = vpop.permute.xlu0 %592
        %596 = vset.pattern.permute.xlu0 0
        %597 = vperm.xlu0 %596, %v571
        %v598 = vpop.permute.xlu0 %597
        %601 = vset.pattern.permute.xlu0 0
        %602 = vperm.xlu0 %601, %v572
        %v603 = vpop.permute.xlu0 %602
        %606 = vset.pattern.permute.xlu0 0
        %607 = vperm.xlu0 %606, %v573
        %v608 = vpop.permute.xlu0 %607
        %611 = vset.pattern.permute.xlu0 0
        %612 = vperm.xlu0 %611, %v574
        %v613 = vpop.permute.xlu0 %612
        %v616 = vsel %vm449, %v551, 0
        %v619 = vsel %vm449, %v552, 0
        %v622 = vsel %vm449, %v553, 0
        %v625 = vsel %vm449, %v554, 0
        %v628 = vsel %vm449, %v555, 0
        %v631 = vsel %vm449, %v556, 0
        %v634 = vsel %vm449, %v557, 0
        %v637 = vsel %vm449, %v558, 0
        %639 = vmatprep.subr.mxu0 %v560
        %640 = vmatpush1.msra.mxu0 %v559
        %641 = vmatprep.subr.mxu0 %v562
        %642 = vmatpush1.msra.mxu0 %v561
        %643 = vmatprep.subr.mxu0 %v564
        %644 = vmatpush1.msra.mxu0 %v563
        %645 = vmatprep.subr.mxu0 %v566
        %646 = vmatpush1.msra.mxu0 %v565
        %647 = vmatprep.subr.mxu0 0.0
        %648 = vmatpush1.msra.mxu0 0.0
        %649 = vmatprep.subr.mxu0 0.0
        %650 = vmatpush1.msra.mxu0 0.0
        %651 = vmatprep.subr.mxu0 0.0
        %652 = vmatpush1.msra.mxu0 0.0
        %653 = vmatprep.subr.mxu0 0.0
        %654 = vmatpush1.msra.mxu0 0.0
        %655 = vmatprep.subr.mxu0 0.0
        %656 = vmatpush1.msra.mxu0 0.0
        %657 = vmatprep.subr.mxu0 0.0
        %658 = vmatpush1.msra.mxu0 0.0
        %659 = vmatprep.subr.mxu0 0.0
        %660 = vmatpush1.msra.mxu0 0.0
        %661 = vmatprep.subr.mxu0 0.0
        %662 = vmatpush1.msra.mxu0 0.0
        %663 = vmatprep.subr.mxu0 0.0
        %664 = vmatpush1.msra.mxu0 0.0
        %665 = vmatprep.subr.mxu0 0.0
        %666 = vmatpush1.msra.mxu0 0.0
        %667 = vmatprep.subr.mxu0 0.0
        %668 = vmatpush1.msra.mxu0 0.0
        %669 = vmatprep.subr.mxu0 0.0
        %670 = vmatpush1.msra.mxu0 0.0
        %671 = vmatprep.subr.mxu0 0.0
        %672 = vmatpush1.msra.mxu0 0.0
        %673 = vmatprep.subr.mxu0 0.0
        %674 = vmatpush1.msra.mxu0 0.0
        %675 = vmatprep.subr.mxu0 0.0
        %676 = vmatpush1.msra.mxu0 0.0
        %677 = vmatprep.subr.mxu0 0.0
        %678 = vmatpush1.msra.mxu0 0.0
        %679 = vmatprep.subr.mxu0 0.0
        %680 = vmatpush1.msra.mxu0 0.0
        %681 = vmatprep.subr.mxu0 0.0
        %682 = vmatpush1.msra.mxu0 0.0
        %683 = vmatprep.subr.mxu0 0.0
        %684 = vmatpush1.msra.mxu0 0.0
        %685 = vmatprep.subr.mxu0 0.0
        %686 = vmatpush1.msra.mxu0 0.0
        %687 = vmatprep.subr.mxu0 0.0
        %688 = vmatpush1.msra.mxu0 0.0
        %689 = vmatprep.subr.mxu0 0.0
        %690 = vmatpush1.msra.mxu0 0.0
        %691 = vmatprep.subr.mxu0 0.0
        %692 = vmatpush1.msra.mxu0 0.0
        %693 = vmatprep.subr.mxu0 0.0
        %694 = vmatpush1.msra.mxu0 0.0
        %695 = vmatprep.subr.mxu0 0.0
        %696 = vmatpush1.msra.mxu0 0.0
        %697 = vmatprep.subr.mxu0 0.0
        %698 = vmatpush1.msra.mxu0 0.0
        %699 = vmatprep.subr.mxu0 0.0
        %700 = vmatpush1.msra.mxu0 0.0
        %701 = vmatprep.subr.mxu0 0.0
        %702 = vmatpush1.msra.mxu0 0.0
        %703 = vmatprep.mubr.f32.mxu0 0.0
        %704 = vmatmul.mubr.f32.gmra.mrb[0].mxu0 %v616
        %v705 = vpop.f32.mrb[0].mxu0
        %v706 = vadd.f32 %v578, %v705
        %v707 = vpop.f32.mrb[0].mxu0
        %v708 = vadd.f32 %v578, %v707
        %709 = vmatprep.mubr.f32.mxu0 0.0
        %710 = vmatmul.mubr.f32.gmra.mrb[0].mxu0 %v619
        %v711 = vpop.f32.mrb[0].mxu0
        %v712 = vadd.f32 %v583, %v711
        %v713 = vpop.f32.mrb[0].mxu0
        %v714 = vadd.f32 %v583, %v713
        %715 = vmatprep.mubr.f32.mxu0 0.0
        %716 = vmatmul.mubr.f32.gmra.mrb[0].mxu0 %v622
        %v717 = vpop.f32.mrb[0].mxu0
        %v718 = vadd.f32 %v588, %v717
        %v719 = vpop.f32.mrb[0].mxu0
        %v720 = vadd.f32 %v588, %v719
        %721 = vmatprep.mubr.f32.mxu0 0.0
        %722 = vmatmul.mubr.f32.gmra.mrb[0].mxu0 %v625
        %v723 = vpop.f32.mrb[0].mxu0
        %v724 = vadd.f32 %v593, %v723
        %v725 = vpop.f32.mrb[0].mxu0
        %v726 = vadd.f32 %v593, %v725
        %727 = vmatprep.mubr.f32.mxu0 0.0
        %728 = vmatmul.mubr.f32.gmra.mrb[0].mxu0 %v628
        %v729 = vpop.f32.mrb[0].mxu0
        %v730 = vadd.f32 %v598, %v729
        %v731 = vpop.f32.mrb[0].mxu0
        %v732 = vadd.f32 %v598, %v731
        %733 = vmatprep.mubr.f32.mxu0 0.0
        %734 = vmatmul.mubr.f32.gmra.mrb[0].mxu0 %v631
        %v735 = vpop.f32.mrb[0].mxu0
        %v736 = vadd.f32 %v603, %v735
        %v737 = vpop.f32.mrb[0].mxu0
        %v738 = vadd.f32 %v603, %v737
        %739 = vmatprep.mubr.f32.mxu0 0.0
        %740 = vmatmul.mubr.f32.gmra.mrb[0].mxu0 %v634
        %v741 = vpop.f32.mrb[0].mxu0
        %v742 = vadd.f32 %v608, %v741
        %v743 = vpop.f32.mrb[0].mxu0
        %v744 = vadd.f32 %v608, %v743
        %745 = vmatprep.mubr.f32.mxu0 0.0
        %746 = vmatmul.mubr.f32.gmra.mrb[0].mxu0 %v637
        %v747 = vpop.f32.mrb[0].mxu0
        %v748 = vadd.f32 %v613, %v747
        %v749 = vpop.f32.mrb[0].mxu0
        %v750 = vadd.f32 %v613, %v749
        %751 = vdwg.mxu0
        %v752 = vmul.f32 %v529, %v529
        %v753 = vmul.f32 %v531, %v531
        %v754 = vmul.f32 %v535, %v535
        %v755 = vmul.f32 %v537, %v537
        %v756 = vmul.f32 %v541, %v541
        %v757 = vmul.f32 %v543, %v543
        %v758 = vmul.f32 %v547, %v547
        %v759 = vmul.f32 %v549, %v549
        %v760 = vadd.f32 %v752, %v753
        %761 = vadd.xlane.f32.xlu0 %v760
        %v762 = vpop.xlane.xlu0 %761
        %v763 = vadd.f32 %v754, %v755
        %764 = vadd.xlane.f32.xlu0 %v763
        %v765 = vpop.xlane.xlu0 %764
        %v766 = vadd.f32 %v756, %v757
        %767 = vadd.xlane.f32.xlu0 %v766
        %v768 = vpop.xlane.xlu0 %767
        %v769 = vadd.f32 %v758, %v759
        %770 = vadd.xlane.f32.xlu0 %v769
        %v771 = vpop.xlane.xlu0 %770
        %v772 = vmax.f32 %v762, 1e-24
        %v773 = vmax.f32 %v765, 1e-24
        %v774 = vmax.f32 %v768, 1e-24
        %v775 = vmax.f32 %v771, 1e-24
        %v776 = vrsqrt.pop %v772
        %v777 = vrsqrt.pop %v773
        %v778 = vrsqrt.pop %v774
        %v779 = vrsqrt.pop %v775
        %v780 = vmul.f32 %v529, %v776
        %v781 = vmul.f32 %v531, %v776
        %v782 = vmul.f32 %v535, %v777
        %v783 = vmul.f32 %v537, %v777
        %v784 = vmul.f32 %v541, %v778
        %v785 = vmul.f32 %v543, %v778
        %v786 = vmul.f32 %v547, %v779
        %v787 = vmul.f32 %v549, %v779
        %v788 = vmul.f32 %v706, %v706
        %v789 = vmul.f32 %v708, %v708
        %v790 = vmul.f32 %v712, %v712
        %v791 = vmul.f32 %v714, %v714
        %v792 = vmul.f32 %v718, %v718
        %v793 = vmul.f32 %v720, %v720
        %v794 = vmul.f32 %v724, %v724
        %v795 = vmul.f32 %v726, %v726
        %v796 = vadd.f32 %v788, %v789
        %797 = vadd.xlane.f32.xlu0 %v796
        %v798 = vpop.xlane.xlu0 %797
        %v799 = vadd.f32 %v790, %v791
        %800 = vadd.xlane.f32.xlu0 %v799
        %v801 = vpop.xlane.xlu0 %800
        %v802 = vadd.f32 %v792, %v793
        %803 = vadd.xlane.f32.xlu0 %v802
        %v804 = vpop.xlane.xlu0 %803
        %v805 = vadd.f32 %v794, %v795
        %806 = vadd.xlane.f32.xlu0 %v805
        %v807 = vpop.xlane.xlu0 %806
        %v808 = vmax.f32 %v798, 1e-24
        %v809 = vmax.f32 %v801, 1e-24
        %v810 = vmax.f32 %v804, 1e-24
        %v811 = vmax.f32 %v807, 1e-24
        %v812 = vrsqrt.pop %v808
        %v813 = vrsqrt.pop %v809
        %v814 = vrsqrt.pop %v810
        %v815 = vrsqrt.pop %v811
        %v816 = vmul.f32 %v706, %v812
        %v817 = vmul.f32 %v708, %v812
        %v818 = vmul.f32 %v712, %v813
        %v819 = vmul.f32 %v714, %v813
        %v820 = vmul.f32 %v718, %v814
        %v821 = vmul.f32 %v720, %v814
        %v822 = vmul.f32 %v724, %v815
        %v823 = vmul.f32 %v726, %v815
        %824 = vmatprep.subr.mxu0 %v817
        %825 = vmatpush1.xpose.msra.mxu0 %v816
        %826 = vmatprep.subr.mxu0 %v819
        %827 = vmatpush1.xpose.msra.mxu0 %v818
        %828 = vmatprep.subr.mxu0 %v821
        %829 = vmatpush1.xpose.msra.mxu0 %v820
        %830 = vmatprep.subr.mxu0 %v823
        %831 = vmatpush1.xpose.msra.mxu0 %v822
        %832 = vmatprep.subr.mxu0 0.0
        %833 = vmatpush1.xpose.msra.mxu0 0.0
        %834 = vmatprep.subr.mxu0 0.0
        %835 = vmatpush1.xpose.msra.mxu0 0.0
        %836 = vmatprep.subr.mxu0 0.0
        %837 = vmatpush1.xpose.msra.mxu0 0.0
        %838 = vmatprep.subr.mxu0 0.0
        %839 = vmatpush1.xpose.msra.mxu0 0.0
        %840 = vmatprep.subr.mxu0 0.0
        %841 = vmatpush1.xpose.msra.mxu0 0.0
        %842 = vmatprep.subr.mxu0 0.0
        %843 = vmatpush1.xpose.msra.mxu0 0.0
        %844 = vmatprep.subr.mxu0 0.0
        %845 = vmatpush1.xpose.msra.mxu0 0.0
        %846 = vmatprep.subr.mxu0 0.0
        %847 = vmatpush1.xpose.msra.mxu0 0.0
        %848 = vmatprep.subr.mxu0 0.0
        %849 = vmatpush1.xpose.msra.mxu0 0.0
        %850 = vmatprep.subr.mxu0 0.0
        %851 = vmatpush1.xpose.msra.mxu0 0.0
        %852 = vmatprep.subr.mxu0 0.0
        %853 = vmatpush1.xpose.msra.mxu0 0.0
        %854 = vmatprep.subr.mxu0 0.0
        %855 = vmatpush1.xpose.msra.mxu0 0.0
        %856 = vmatprep.subr.mxu0 0.0
        %857 = vmatpush1.xpose.msra.mxu0 0.0
        %858 = vmatprep.subr.mxu0 0.0
        %859 = vmatpush1.xpose.msra.mxu0 0.0
        %860 = vmatprep.subr.mxu0 0.0
        %861 = vmatpush1.xpose.msra.mxu0 0.0
        %862 = vmatprep.subr.mxu0 0.0
        %863 = vmatpush1.xpose.msra.mxu0 0.0
        %864 = vmatprep.subr.mxu0 0.0
        %865 = vmatpush1.xpose.msra.mxu0 0.0
        %866 = vmatprep.subr.mxu0 0.0
        %867 = vmatpush1.xpose.msra.mxu0 0.0
        %868 = vmatprep.subr.mxu0 0.0
        %869 = vmatpush1.xpose.msra.mxu0 0.0
        %870 = vmatprep.subr.mxu0 0.0
        %871 = vmatpush1.xpose.msra.mxu0 0.0
        %872 = vmatprep.subr.mxu0 0.0
        %873 = vmatpush1.xpose.msra.mxu0 0.0
        %874 = vmatprep.subr.mxu0 0.0
        %875 = vmatpush1.xpose.msra.mxu0 0.0
        %876 = vmatprep.subr.mxu0 0.0
        %877 = vmatpush1.xpose.msra.mxu0 0.0
        %878 = vmatprep.subr.mxu0 0.0
        %879 = vmatpush1.xpose.msra.mxu0 0.0
        %880 = vmatprep.subr.mxu0 0.0
        %881 = vmatpush1.xpose.msra.mxu0 0.0
        %882 = vmatprep.subr.mxu0 0.0
        %883 = vmatpush1.xpose.msra.mxu0 0.0
        %884 = vmatprep.subr.mxu0 0.0
        %885 = vmatpush1.xpose.msra.mxu0 0.0
        %886 = vmatprep.subr.mxu0 0.0
        %887 = vmatpush1.xpose.msra.mxu0 0.0
        %888 = vmatprep.mubr.f32.mxu0 %v781
        %889 = vmatmul.mubr.f32.gmra.mrb[0].mxu0 %v780
        %v890 = vpop.f32.mrb[0].mxu0
        %v891 = vadd.f32 0.0, %v890
        %v892 = vpop.f32.mrb[0].mxu0
        %893 = vmatprep.mubr.f32.mxu0 %v783
        %894 = vmatmul.mubr.f32.gmra.mrb[0].mxu0 %v782
        %v895 = vpop.f32.mrb[0].mxu0
        %v896 = vadd.f32 0.0, %v895
        %v897 = vpop.f32.mrb[0].mxu0
        %898 = vmatprep.mubr.f32.mxu0 %v785
        %899 = vmatmul.mubr.f32.gmra.mrb[0].mxu0 %v784
        %v900 = vpop.f32.mrb[0].mxu0
        %v901 = vadd.f32 0.0, %v900
        %v902 = vpop.f32.mrb[0].mxu0
        %903 = vmatprep.mubr.f32.mxu0 %v787
        %904 = vmatmul.mubr.f32.gmra.mrb[0].mxu0 %v786
        %v905 = vpop.f32.mrb[0].mxu0
        %v906 = vadd.f32 0.0, %v905
        %v907 = vpop.f32.mrb[0].mxu0
        %908 = vdwg.mxu0
        %v909 = vld [vmem:[%s8] sm:$0xff]
        %v910 = vld [vmem:[%s8 + $0x8] sm:$0xff]
        %v911 = vld [vmem:[%s8 + $0x10] sm:$0xff]
        %v912 = vld [vmem:[%s8 + $0x18] sm:$0xff]
        %v913 = vmul.f32 %v891, %v909
        %v914 = vmul.f32 %v896, %v910
        %v915 = vmul.f32 %v901, %v911
        %v916 = vmul.f32 %v906, %v912
        %v917 = vld [vmem:[#allocation5] sm:$0xff]
        %v918 = vld [vmem:[#allocation5 + $0x8] sm:$0xff]
        %v919 = vld [vmem:[#allocation5 + $0x10] sm:$0xff]
        %v920 = vld [vmem:[#allocation5 + $0x18] sm:$0xff]
        %v921 = vadd.f32 %v913, %v917
        %v922 = vadd.f32 %v914, %v918
        %v923 = vadd.f32 %v915, %v919
        %v924 = vadd.f32 %v916, %v920
        %v925 = vsel %vm449, %v921, -inf
        %926 = vmax.xlane.f32.xlu0 %v925
        %v927 = vpop.xlane.xlu0 %926
        %v928 = vsel %vm449, %v922, -inf
        %929 = vmax.xlane.f32.xlu0 %v928
        %v930 = vpop.xlane.xlu0 %929
        %v931 = vsel %vm449, %v923, -inf
        %932 = vmax.xlane.f32.xlu0 %v931
        %v933 = vpop.xlane.xlu0 %932
        %v934 = vsel %vm449, %v924, -inf
        %935 = vmax.xlane.f32.xlu0 %v934
        %v936 = vpop.xlane.xlu0 %935
        %v937 = vsub.f32 %v921, %v927
        %v938 = vsub.f32 %v922, %v930
        %v939 = vsub.f32 %v923, %v933
        %v940 = vsub.f32 %v924, %v936
        %v941 = vmul.f32 %v937, 1.442695
        %v942 = vpow.pop %v941
        %v943 = vmul.f32 %v938, 1.442695
        %v944 = vpow.pop %v943
        %v945 = vmul.f32 %v939, 1.442695
        %v946 = vpow.pop %v945
        %v947 = vmul.f32 %v940, 1.442695
        %v948 = vpow.pop %v947
        %v949 = vsel %vm449, %v942, 0.0
        %950 = vadd.xlane.f32.xlu0 %v949
        %v951 = vpop.xlane.xlu0 %950
        %v952 = vsel %vm449, %v944, 0.0
        %953 = vadd.xlane.f32.xlu0 %v952
        %v954 = vpop.xlane.xlu0 %953
        %v955 = vsel %vm449, %v946, 0.0
        %956 = vadd.xlane.f32.xlu0 %v955
        %v957 = vpop.xlane.xlu0 %956
        %v958 = vsel %vm449, %v948, 0.0
        %959 = vadd.xlane.f32.xlu0 %v958
        %v960 = vpop.xlane.xlu0 %959
        %v961 = vrcp.pop %v951
        %v962 = vrcp.pop %v954
        %v963 = vrcp.pop %v957
        %v964 = vrcp.pop %v960
        %v965 = vmul.f32 %v942, %v961
        %v966 = vmul.f32 %v944, %v962
        %v967 = vmul.f32 %v946, %v963
        %v968 = vmul.f32 %v948, %v964
        %v970 = vsel %vm449, %v965, 0
        %v973 = vsel %vm449, %v966, 0
        %v976 = vsel %vm449, %v967, 0
        %v979 = vsel %vm449, %v968, 0
        %981 = vmatprep.subr.mxu0 %v732
        %982 = vmatpush1.msra.mxu0 %v730
        %983 = vmatprep.subr.mxu0 %v738
        %984 = vmatpush1.msra.mxu0 %v736
        %985 = vmatprep.subr.mxu0 %v744
        %986 = vmatpush1.msra.mxu0 %v742
        %987 = vmatprep.subr.mxu0 %v750
        %988 = vmatpush1.msra.mxu0 %v748
        %989 = vmatprep.subr.mxu0 0.0
        %990 = vmatpush1.msra.mxu0 0.0
        %991 = vmatprep.subr.mxu0 0.0
        %992 = vmatpush1.msra.mxu0 0.0
        %993 = vmatprep.subr.mxu0 0.0
        %994 = vmatpush1.msra.mxu0 0.0
        %995 = vmatprep.subr.mxu0 0.0
        %996 = vmatpush1.msra.mxu0 0.0
        %997 = vmatprep.subr.mxu0 0.0
        %998 = vmatpush1.msra.mxu0 0.0
        %999 = vmatprep.subr.mxu0 0.0
        %1000 = vmatpush1.msra.mxu0 0.0
        %1001 = vmatprep.subr.mxu0 0.0
        %1002 = vmatpush1.msra.mxu0 0.0
        %1003 = vmatprep.subr.mxu0 0.0
        %1004 = vmatpush1.msra.mxu0 0.0
        %1005 = vmatprep.subr.mxu0 0.0
        %1006 = vmatpush1.msra.mxu0 0.0
        %1007 = vmatprep.subr.mxu0 0.0
        %1008 = vmatpush1.msra.mxu0 0.0
        %1009 = vmatprep.subr.mxu0 0.0
        %1010 = vmatpush1.msra.mxu0 0.0
        %1011 = vmatprep.subr.mxu0 0.0
        %1012 = vmatpush1.msra.mxu0 0.0
        %1013 = vmatprep.subr.mxu0 0.0
        %1014 = vmatpush1.msra.mxu0 0.0
        %1015 = vmatprep.subr.mxu0 0.0
        %1016 = vmatpush1.msra.mxu0 0.0
        %1017 = vmatprep.subr.mxu0 0.0
        %1018 = vmatpush1.msra.mxu0 0.0
        %1019 = vmatprep.subr.mxu0 0.0
        %1020 = vmatpush1.msra.mxu0 0.0
        %1021 = vmatprep.subr.mxu0 0.0
        %1022 = vmatpush1.msra.mxu0 0.0
        %1023 = vmatprep.subr.mxu0 0.0
        %1024 = vmatpush1.msra.mxu0 0.0
        %1025 = vmatprep.subr.mxu0 0.0
        %1026 = vmatpush1.msra.mxu0 0.0
        %1027 = vmatprep.subr.mxu0 0.0
        %1028 = vmatpush1.msra.mxu0 0.0
        %1029 = vmatprep.subr.mxu0 0.0
        %1030 = vmatpush1.msra.mxu0 0.0
        %1031 = vmatprep.subr.mxu0 0.0
        %1032 = vmatpush1.msra.mxu0 0.0
        %1033 = vmatprep.subr.mxu0 0.0
        %1034 = vmatpush1.msra.mxu0 0.0
        %1035 = vmatprep.subr.mxu0 0.0
        %1036 = vmatpush1.msra.mxu0 0.0
        %1037 = vmatprep.subr.mxu0 0.0
        %1038 = vmatpush1.msra.mxu0 0.0
        %1039 = vmatprep.subr.mxu0 0.0
        %1040 = vmatpush1.msra.mxu0 0.0
        %1041 = vmatprep.subr.mxu0 0.0
        %1042 = vmatpush1.msra.mxu0 0.0
        %1043 = vmatprep.subr.mxu0 0.0
        %1044 = vmatpush1.msra.mxu0 0.0
        %1045 = vmatprep.mubr.f32.mxu0 0.0
        %1046 = vmatmul.mubr.f32.gmra.mrb[0].mxu0 %v970
        %v1047 = vpop.f32.mrb[0].mxu0
        %v1048 = vadd.f32 0.0, %v1047
        %v1049 = vpop.f32.mrb[0].mxu0
        %v1050 = vadd.f32 0.0, %v1049
        %1051 = vmatprep.mubr.f32.mxu0 0.0
        %1052 = vmatmul.mubr.f32.gmra.mrb[0].mxu0 %v973
        %v1053 = vpop.f32.mrb[0].mxu0
        %v1054 = vadd.f32 0.0, %v1053
        %v1055 = vpop.f32.mrb[0].mxu0
        %v1056 = vadd.f32 0.0, %v1055
        %1057 = vmatprep.mubr.f32.mxu0 0.0
        %1058 = vmatmul.mubr.f32.gmra.mrb[0].mxu0 %v976
        %v1059 = vpop.f32.mrb[0].mxu0
        %v1060 = vadd.f32 0.0, %v1059
        %v1061 = vpop.f32.mrb[0].mxu0
        %v1062 = vadd.f32 0.0, %v1061
        %1063 = vmatprep.mubr.f32.mxu0 0.0
        %1064 = vmatmul.mubr.f32.gmra.mrb[0].mxu0 %v979
        %v1065 = vpop.f32.mrb[0].mxu0
        %v1066 = vadd.f32 0.0, %v1065
        %v1067 = vpop.f32.mrb[0].mxu0
        %v1068 = vadd.f32 0.0, %v1067
        %1069 = vdwg.mxu0
        %v1070 = vld [vmem:[%s6] sm:$0xff]
        %v1071 = vld [vmem:[%s6 + $0x8] sm:$0xff]
        %v1072 = vld [vmem:[%s6 + $0x10] sm:$0xff]
        %v1073 = vld [vmem:[%s6 + $0x18] sm:$0xff]
        %v1074 = vld [vmem:[%s7] sm:$0xff]
        %v1075 = vld [vmem:[%s7 + $0x8] sm:$0xff]
        %v1076 = vld [vmem:[%s7 + $0x10] sm:$0xff]
        %v1077 = vld [vmem:[%s7 + $0x18] sm:$0xff]
        %1079 = vset.pattern.permute.xlu0 0
        %1080 = vperm.xlu0 %1079, %v1074
        %v1081 = vpop.permute.xlu0 %1080
        %1084 = vset.pattern.permute.xlu0 0
        %1085 = vperm.xlu0 %1084, %v1075
        %v1086 = vpop.permute.xlu0 %1085
        %1089 = vset.pattern.permute.xlu0 0
        %1090 = vperm.xlu0 %1089, %v1076
        %v1091 = vpop.permute.xlu0 %1090
        %1094 = vset.pattern.permute.xlu0 0
        %1095 = vperm.xlu0 %1094, %v1077
        %v1096 = vpop.permute.xlu0 %1095
        %v1099 = vsel %vm449, %v1070, 0
        %v1102 = vsel %vm449, %v1071, 0
        %v1105 = vsel %vm449, %v1072, 0
        %v1108 = vsel %vm449, %v1073, 0
        %1110 = vmatprep.subr.mxu0 %v1050
        %1111 = vmatpush1.msra.mxu0 %v1048
        %1112 = vmatprep.subr.mxu0 %v1056
        %1113 = vmatpush1.msra.mxu0 %v1054
        %1114 = vmatprep.subr.mxu0 %v1062
        %1115 = vmatpush1.msra.mxu0 %v1060
        %1116 = vmatprep.subr.mxu0 %v1068
        %1117 = vmatpush1.msra.mxu0 %v1066
        %1118 = vmatprep.subr.mxu0 0.0
        %1119 = vmatpush1.msra.mxu0 0.0
        %1120 = vmatprep.subr.mxu0 0.0
        %1121 = vmatpush1.msra.mxu0 0.0
        %1122 = vmatprep.subr.mxu0 0.0
        %1123 = vmatpush1.msra.mxu0 0.0
        %1124 = vmatprep.subr.mxu0 0.0
        %1125 = vmatpush1.msra.mxu0 0.0
        %1126 = vmatprep.subr.mxu0 0.0
        %1127 = vmatpush1.msra.mxu0 0.0
        %1128 = vmatprep.subr.mxu0 0.0
        %1129 = vmatpush1.msra.mxu0 0.0
        %1130 = vmatprep.subr.mxu0 0.0
        %1131 = vmatpush1.msra.mxu0 0.0
        %1132 = vmatprep.subr.mxu0 0.0
        %1133 = vmatpush1.msra.mxu0 0.0
        %1134 = vmatprep.subr.mxu0 0.0
        %1135 = vmatpush1.msra.mxu0 0.0
        %1136 = vmatprep.subr.mxu0 0.0
        %1137 = vmatpush1.msra.mxu0 0.0
        %1138 = vmatprep.subr.mxu0 0.0
        %1139 = vmatpush1.msra.mxu0 0.0
        %1140 = vmatprep.subr.mxu0 0.0
        %1141 = vmatpush1.msra.mxu0 0.0
        %1142 = vmatprep.subr.mxu0 0.0
        %1143 = vmatpush1.msra.mxu0 0.0
        %1144 = vmatprep.subr.mxu0 0.0
        %1145 = vmatpush1.msra.mxu0 0.0
        %1146 = vmatprep.subr.mxu0 0.0
        %1147 = vmatpush1.msra.mxu0 0.0
        %1148 = vmatprep.subr.mxu0 0.0
        %1149 = vmatpush1.msra.mxu0 0.0
        %1150 = vmatprep.subr.mxu0 0.0
        %1151 = vmatpush1.msra.mxu0 0.0
        %1152 = vmatprep.subr.mxu0 0.0
        %1153 = vmatpush1.msra.mxu0 0.0
        %1154 = vmatprep.subr.mxu0 0.0
        %1155 = vmatpush1.msra.mxu0 0.0
        %1156 = vmatprep.subr.mxu0 0.0
        %1157 = vmatpush1.msra.mxu0 0.0
        %1158 = vmatprep.subr.mxu0 0.0
        %1159 = vmatpush1.msra.mxu0 0.0
        %1160 = vmatprep.subr.mxu0 0.0
        %1161 = vmatpush1.msra.mxu0 0.0
        %1162 = vmatprep.subr.mxu0 0.0
        %1163 = vmatpush1.msra.mxu0 0.0
        %1164 = vmatprep.subr.mxu0 0.0
        %1165 = vmatpush1.msra.mxu0 0.0
        %1166 = vmatprep.subr.mxu0 0.0
        %1167 = vmatpush1.msra.mxu0 0.0
        %1168 = vmatprep.subr.mxu0 0.0
        %1169 = vmatpush1.msra.mxu0 0.0
        %1170 = vmatprep.subr.mxu0 0.0
        %1171 = vmatpush1.msra.mxu0 0.0
        %1172 = vmatprep.subr.mxu0 0.0
        %1173 = vmatpush1.msra.mxu0 0.0
        %1174 = vmatprep.mubr.f32.mxu0 0.0
        %1175 = vmatmul.mubr.f32.gmra.mrb[0].mxu0 %v1099
        %v1176 = vpop.f32.mrb[0].mxu0
        %v1177 = vadd.f32 %v1081, %v1176
        %v1178 = vpop.f32.mrb[0].mxu0
        %v1179 = vadd.f32 %v1081, %v1178
        %1180 = vmatprep.mubr.f32.mxu0 0.0
        %1181 = vmatmul.mubr.f32.gmra.mrb[0].mxu0 %v1102
        %v1182 = vpop.f32.mrb[0].mxu0
        %v1183 = vadd.f32 %v1086, %v1182
        %v1184 = vpop.f32.mrb[0].mxu0
        %v1185 = vadd.f32 %v1086, %v1184
        %1186 = vmatprep.mubr.f32.mxu0 0.0
        %1187 = vmatmul.mubr.f32.gmra.mrb[0].mxu0 %v1105
        %v1188 = vpop.f32.mrb[0].mxu0
        %v1189 = vadd.f32 %v1091, %v1188
        %v1190 = vpop.f32.mrb[0].mxu0
        %v1191 = vadd.f32 %v1091, %v1190
        %1192 = vmatprep.mubr.f32.mxu0 0.0
        %1193 = vmatmul.mubr.f32.gmra.mrb[0].mxu0 %v1108
        %v1194 = vpop.f32.mrb[0].mxu0
        %v1195 = vadd.f32 %v1096, %v1194
        %v1196 = vpop.f32.mrb[0].mxu0
        %v1197 = vadd.f32 %v1096, %v1196
        %1198 = vdwg.mxu0
        %1199 = vst [vmem:[%s407] sm:$0xff] %v1177
        %1200 = vst [vmem:[%s407 + $0x8] sm:$0xff] %v1179
        %1201 = vst [vmem:[%s407 + $0x10] sm:$0xff] %v1183
        %1202 = vst [vmem:[%s407 + $0x18] sm:$0xff] %v1185
        %1203 = vst [vmem:[%s407 + $0x20] sm:$0xff] %v1189
        %1204 = vst [vmem:[%s407 + $0x28] sm:$0xff] %v1191
        %1205 = vst [vmem:[%s407 + $0x30] sm:$0xff] %v1195
        %1206 = vst [vmem:[%s407 + $0x38] sm:$0xff] %v1197
        %s1207 = sand.u32 %s256, 1
        %s1208 = scalar_lea.sflag [#allocation4], %s1207
        %s1209 = sand.u32 %s256, 1
        %s1210 = smul.addr %s1209, 64
        %s1211 = scalar_lea.vmem [#allocation7], %s1210
        // Predicated region
        $region69: #{tpu_custom_call.1} parent=59 // pred_check
          %p1212 = pneg %p266
        $region70: #{tpu_custom_call.1} parent=59 // pred_check_branch
          %1214 = sbr.rel (%p1212) target = $region72
        $region71: #{tpu_custom_call.1} parent=59 // pred_region
          %s1216 = ssub.s32 1024, 1024
          %1217 = vsyncadd %s1208, %s1216
          %s1218 = smul.addr %s28, 8
          %s1219 = smul.addr %s1218, 128
          %s1220 = scalar_lea.hbm %s10, %s1219
          %s1221 = sshll.u32 %s1211, 4
          %s1222 = int_to_ptr.vmem [resolvable:$true] %s1221
          %1227 = dma.vmem_to_hbm [thread:$0]  %s1222, 1024, %s1220, %s1208, 256, 256, 16
        $region72: #{tpu_custom_call.1} parent=59 // pred_fallthru
          _
      $region60: #{tpu_custom_call.1} parent=5 // pred_fallthru
        _
      %p1228 = scmp.le.s32.totalorder 2, %s23
      // Predicated region
      $region73: #{tpu_custom_call.1} parent=5 // pred_check
        %p1229 = pneg %p1228
      $region74: #{tpu_custom_call.1} parent=5 // pred_check_branch
        %1231 = sbr.rel (%p1229) target = $region76
      $region75: #{tpu_custom_call.1} parent=5 // pred_region
        %s1232 = ssub.s32 %s23, 2
        // Predicated region
        $region77: #{tpu_custom_call.1} parent=75 // pred_check
          %p1233 = pneg %p272
        $region78: #{tpu_custom_call.1} parent=75 // pred_check_branch
          %1235 = sbr.rel (%p1233) target = $region80
        $region79: #{tpu_custom_call.1} parent=75 // pred_region
          %s1236 = sand.u32 %s257, 1
          %s1237 = scalar_lea.sflag [#allocation4], %s1236
          %s1238 = sand.u32 %s257, 1
          %s1239 = smul.addr %s1238, 64
          %s1240 = scalar_lea.vmem [#allocation7], %s1239
          %1241 = dma.done %s1237, 1024
        $region80: #{tpu_custom_call.1} parent=75 // pred_fallthru
          _
      $region76: #{tpu_custom_call.1} parent=5 // pred_fallthru
        _
    $region6: #{tpu_custom_call.1} parent=1 // loop_footer
      %s27 = sadd.s32 1, %s23
    $region7: #{tpu_custom_call.1} parent=1 // loop_footer_branch
      %22 = sbr.rel target = $region3
    $region8: #{tpu_custom_call.1} parent=1 // loop_exit
      _
    %1242 = vsyncpa [#allocation3], 1
    %s1243 = scalar_lea.sflag [#allocation3], 1
    %1244 = vsyncpa %s1243, 1
    %1245 = vsyncpa [#allocation6], 1
    %1246 = vsyncpa [#allocation4], 1
    %s1247 = scalar_lea.sflag [#allocation4], 1
    %1248 = vsyncpa %s1247, 1

</llo_original>
